<compile_context>
chip_gen: v6e
topology: v6e:2x2x1
jax: 0.10.0
libtpu: 0.0.40
codegen_flags: <defaults>
</compile_context>

<pallas_src>
import math

import jax
import jax.numpy as jnp
from jax.experimental import pallas as pl
from jax.experimental.pallas import tpu as pltpu


def _scaler_kernel(x_ref, stats_ref, o_ref):
    # stats_ref: (2, tile_cols) resident f32 tile; row 0 = means, row 1 = 1/stds.
    stats = stats_ref[...]
    means = stats[0:1, :]          # (1, C) broadcast against the row tile
    inv_stds = stats[1:2, :]       # (1, C)
    x = x_ref[...].astype(jnp.float32)
    o_ref[...] = ((x - means) * inv_stds).astype(o_ref.dtype)


def standard_scaler_transform(x, means, stds, *, target_block_bytes=2 << 20):
    """Pallas equivalent of StandardScalerTorch.forward / .transform.

    x:     (..., F) float array
    means: (F,)     float array
    stds:  (F,)     float array (assumed nonzero; fit() adds EPSILON upstream)
    returns (..., F): (x - means) / stds
    """
    orig_shape = x.shape
    F = orig_shape[-1]
    assert means.shape == (F,) and stds.shape == (F,)

    out_dtype = x.dtype
    itemsize = jnp.dtype(out_dtype).itemsize

    # Stats kept in f32 (single rounding of 1/std); the streaming kernel only
    # does subtract + multiply on the VALU and casts on store.
    means_f32 = means.astype(jnp.float32)
    inv_stds_f32 = 1.0 / stds.astype(jnp.float32)

    # Flatten leading dims into rows (contiguous row-major -> free reshape).
    x2d = x.reshape(-1, F)
    N = x2d.shape[0]

    # Lane folding: fold k = 128 // gcd(F, 128) rows into the lane axis so the
    # trailing BlockSpec dim F_fold = lcm(F, 128) is a multiple of 128 for any
    # F (unmasked full-width vst, every vreg lane used).
    fold = 128 // math.gcd(F, 128)
    F_fold = F * fold

    # Pad only the <= fold-1 leftover rows (and only when N % fold != 0); the
    # grid handles a ragged final row-block itself, so the aligned (common)
    # case incurs no pad / prefix-slice copies and no dead-row DMA at all.
    pad_rows = (-N) % fold
    if pad_rows:
        # TODO(synk): for misaligned N this jnp.pad + trailing slice are
        # full-array HBM copies outside the kernel; a donated-output tail call
        # could remove them but is not worth the complexity here.
        x2d = jnp.pad(x2d, ((0, pad_rows), (0, 0)))
    n_fold = (N + pad_rows) // fold
    x_fold = x2d.reshape(n_fold, F_fold)     # contiguous row-major -> free

    # Single resident (2, F_fold) f32 stats tile (one constant DMA).
    stats = jnp.stack(
        [jnp.tile(means_f32, (fold,)), jnp.tile(inv_stds_f32, (fold,))], axis=0
    )

    # --- Block sizing --------------------------------------------------------
    # ~2 MiB x-blocks => ~4x that (double-buffered in + out) ~= 8-10 MiB VMEM:
    # under v5e's 16 MiB scoped default, v6e/v7x's 32 MiB scoped default and
    # v7x's 64 MiB physical per-TC budget. If target_block_bytes is ever raised
    # past ~3-4 MiB, also set vmem_limit_bytes in CompilerParams.
    #
    # Lane-axis tile: full F_fold unless F is so wide that even 32 rows blow
    # the budget, in which case add a second (feature) grid axis.
    if 32 * F_fold * itemsize <= target_block_bytes:
        tile_cols = F_fold
    else:
        tile_cols = max(128, (target_block_bytes // (32 * itemsize)) // 128 * 128)
        tile_cols = min(tile_cols, F_fold)

    if n_fold <= 32:
        tile_rows = n_fold               # single full-extent row block
    else:
        rows_per_block = max(
            32, (target_block_bytes // (tile_cols * itemsize)) // 32 * 32
        )
        # Cap so the row axis has >= ~8 grid steps on larger inputs (v7x
        # megacore sharding + pipeline overlap), rounded to 32 for packed
        # sublane alignment (bf16: 16/vreg, int8/fp8: 32/vreg).
        rows_for_8_steps = max(32, ((pl.cdiv(n_fold, 8) + 31) // 32) * 32)
        tile_rows = min(rows_per_block, rows_for_8_steps)

    grid = (pl.cdiv(n_fold, tile_rows), pl.cdiv(F_fold, tile_cols))

    out = pl.pallas_call(
        _scaler_kernel,
        out_shape=jax.ShapeDtypeStruct((n_fold, F_fold), out_dtype),
        grid_spec=pltpu.PrefetchScalarGridSpec(
            num_scalar_prefetch=0,
            grid=grid,
            in_specs=[
                pl.BlockSpec((tile_rows, tile_cols), lambda i, j: (i, j)),  # X tile
                pl.BlockSpec((2, tile_cols), lambda i, j: (0, j)),          # stats
            ],
            out_specs=pl.BlockSpec((tile_rows, tile_cols), lambda i, j: (i, j)),
        ),
        compiler_params=pltpu.CompilerParams(
            dimension_semantics=("parallel", "parallel"),
        ),
        cost_estimate=pl.CostEstimate(
            flops=2 * N * F,
            transcendentals=0,
            bytes_accessed=2 * N * F * itemsize,
        ),
    )(x_fold, stats)

    out = out.reshape(N + pad_rows, F)
    if pad_rows:
        out = out[:N]
    return out.reshape(orig_shape)


if __name__ == "__main__":
    key = jax.random.PRNGKey(0)
    kx, km, ks, kx2, km2, ks2 = jax.random.split(key, 6)

    # Primary example: (batch, seq, F) targets with F = 32 features.
    B, S, F = 2, 64, 32
    x = jax.random.normal(kx, (B, S, F), dtype=jnp.float32)

    # Deterministic synthetic "fitted" buffers (shapes from __init__ stats_dim).
    # stds kept well away from zero (fit() adds EPSILON before the kernel sees it).
    means = jax.random.normal(km, (F,), dtype=jnp.float32)
    stds = jnp.abs(jax.random.normal(ks, (F,), dtype=jnp.float32)) + 0.5 + 1e-5

    out = standard_scaler_transform(x, means, stds)
    out = jax.block_until_ready(out)

    # Reference check (plain JAX, same broadcasting as torch's transform()).
    ref = (x - means) / stds
    assert out.shape == ref.shape and out.dtype == ref.dtype
    assert jnp.allclose(out, ref, atol=1e-5, rtol=1e-5)

    # Second check: F that does not divide 128 and a row count not divisible by
    # the fold factor (exercises generalized lane folding + the pad fallback).
    F2, N2 = 96, 33
    x2 = jax.random.normal(kx2, (N2, F2), dtype=jnp.float32)
    means2 = jax.random.normal(km2, (F2,), dtype=jnp.float32)
    stds2 = jnp.abs(jax.random.normal(ks2, (F2,), dtype=jnp.float32)) + 0.5
    out2 = jax.block_until_ready(standard_scaler_transform(x2, means2, stds2))
    ref2 = (x2 - means2) / stds2
    assert out2.shape == ref2.shape and jnp.allclose(out2, ref2, atol=1e-5, rtol=1e-5)

    # TODO(synk): fit()/torch_nanstd (nan-aware dataset statistics) are
    # training-time utilities, not part of forward(); not implemented as a kernel.
    print("KERNEL_OK")
</pallas_src>

<mosaic_0001>
module attributes {stable_mosaic.version = 11 : i64} {
  func.func @_scaler_kernel(%arg0: i32, %arg1: i32, %arg2: memref<32x128xf32, #tpu.memory_space<vmem>>, %arg3: memref<2x128xf32, #tpu.memory_space<vmem>>, %arg4: memref<32x128xf32, #tpu.memory_space<vmem>>) attributes {dimension_semantics = [#tpu.dimension_semantics<parallel>, #tpu.dimension_semantics<parallel>], iteration_bounds = array<i64: 1, 1>, scalar_prefetch = 0 : i64, scratch_operands = 0 : i64, tpu.core_type = #tpu.core_type<tc>, window_params = [{transform_indices = @transform_0, window_bounds = array<i64: 32, 128>}, {transform_indices = @transform_1, window_bounds = array<i64: 2, 128>}, {transform_indices = @transform_2, window_bounds = array<i64: 32, 128>}]} {
    %c0 = arith.constant 0 : index
    %c0_0 = arith.constant 0 : index
    %0 = vector.load %arg3[%c0, %c0_0] : memref<2x128xf32, #tpu.memory_space<vmem>>, vector<2x128xf32>
    %1 = vector.extract_strided_slice %0 {offsets = [0, 0], sizes = [1, 128], strides = [1, 1]} : vector<2x128xf32> to vector<1x128xf32>
    %2 = vector.extract_strided_slice %0 {offsets = [1, 0], sizes = [1, 128], strides = [1, 1]} : vector<2x128xf32> to vector<1x128xf32>
    %c0_1 = arith.constant 0 : index
    %c0_2 = arith.constant 0 : index
    %3 = vector.load %arg2[%c0_1, %c0_2] : memref<32x128xf32, #tpu.memory_space<vmem>>, vector<32x128xf32>
    %4 = vector.broadcast %1 : vector<1x128xf32> to vector<32x128xf32>
    %5 = arith.subf %3, %4 : vector<32x128xf32>
    %6 = vector.broadcast %2 : vector<1x128xf32> to vector<32x128xf32>
    %7 = arith.mulf %5, %6 : vector<32x128xf32>
    %c0_3 = arith.constant 0 : index
    %c0_4 = arith.constant 0 : index
    %8 = vector.load %arg4[%c0_3, %c0_4] : memref<32x128xf32, #tpu.memory_space<vmem>>, vector<32x128xf32>
    tpu.vector_store %arg4[%c0_3, %c0_4], %7 {strides = array<i32>} : memref<32x128xf32, #tpu.memory_space<vmem>>, vector<32x128xf32>,
    return
  }
  func.func @transform_0(%arg0: i32, %arg1: i32) -> (i32, i32) {
    %c0_i32 = arith.constant 0 : i32
    return %arg0, %arg1 : i32, i32
  }
  func.func @transform_1(%arg0: i32, %arg1: i32) -> (i32, i32) {
    %c0_i32 = arith.constant 0 : i32
    %c0_i32_0 = arith.constant 0 : i32
    return %c0_i32, %arg1 : i32, i32
  }
  func.func @transform_2(%arg0: i32, %arg1: i32) -> (i32, i32) {
    %c0_i32 = arith.constant 0 : i32
    return %arg0, %arg1 : i32, i32
  }
}

</mosaic_0001>

<llo_original>
// kernel: tpu_custom_call.1
$region0: #{tpu_custom_call.1}
  #allocation0 [shape = 'u32[]', space=smem, size = 0x4, offset = 0x4, fixed_abs, tag = 'smem constant byte address 0x4 - core index']
  #allocation1 [shape = 'u32[144,128]{1,0:T(1,128)}', space=vmem, size = 0x12000, scoped, tag = 'internal scratch']
  %s0 = inlined_call_operand.hbm [shape: f32[32,128], index: 0, kind: input, shape index: {}]
  %s1 = inlined_call_operand.hbm [shape: f32[2,128], index: 1, kind: input, shape index: {}]
  %s2 = inlined_call_operand.hbm [shape: f32[32,128], index: 2, kind: output, shape index: {}]
  %s3 = sld [smem:[#allocation0]]
  $region26: #{tpu_custom_call.1} parent=0
    _
  %s5 = ssub.s32 1, %s3
  %s6 = scalar_select 0, %s5, %s3
  $region1: #{tpu_custom_call.1} parent=0
    #allocation2 [shape = 'u8[16384]{0}', space=vmem, size = 0x4000, scoped, tag = 'input window, operand 0, single buffered']
    #allocation3 [shape = 's32[1]{0}', space=sflag, size = 0x4, scoped, tag = 'scoped memory for tpu_custom_call.1']
    #allocation4 [shape = 's32[1]{0}', space=sflag, size = 0x4, scoped, tag = 'scoped memory for tpu_custom_call.1']
    #allocation5 [shape = 'u8[1024]{0}', space=vmem, size = 0x400, scoped, tag = 'input window, operand 1, single buffered']
    #allocation6 [shape = 's32[1]{0}', space=sflag, size = 0x4, scoped, tag = 'scoped memory for tpu_custom_call.1']
    #allocation7 [shape = 'u8[16384]{0}', space=vmem, size = 0x4000, scoped, tag = 'output window, operand 0, single buffered']
    %7 = vsyncpa [#allocation3], 0
    %8 = vsyncpa [#allocation6], 0
    %9 = vsyncpa [#allocation4], 0
    // Predicated region
    $region2: #{tpu_custom_call.1} parent=1 // pred_check
      _
    $region3: #{tpu_custom_call.1} parent=1 // pred_check_branch
      %11 = sbr.rel (0) target = $region5
    $region4: #{tpu_custom_call.1} parent=1 // pred_region
      %s13 = ssub.s32 512, 512
      %14 = vsyncadd [#allocation3], %s13
      %s15 = sshll.u32 [#allocation2], 4
      %s16 = int_to_ptr.vmem [resolvable:$true] %s15
      %21 = dma.hbm_to_vmem [thread:$0]  %s0, 512, %s16, [#allocation3], 128, 128, 8
    $region5: #{tpu_custom_call.1} parent=1 // pred_fallthru
      _
    // Predicated region
    $region6: #{tpu_custom_call.1} parent=1 // pred_check
      _
    $region7: #{tpu_custom_call.1} parent=1 // pred_check_branch
      %23 = sbr.rel (0) target = $region9
    $region8: #{tpu_custom_call.1} parent=1 // pred_region
      %s25 = ssub.s32 32, 32
      %26 = vsyncadd [#allocation6], %s25
      %s28 = sshll.u32 [#allocation5], 4
      %s29 = int_to_ptr.vmem [resolvable:$true] %s28
      %31 = dma.hbm_to_vmem [thread:$0]  %s1, 32, %s29, [#allocation6]
    $region9: #{tpu_custom_call.1} parent=1 // pred_fallthru
      _
    // Predicated region
    $region10: #{tpu_custom_call.1} parent=1 // pred_check
      _
    $region11: #{tpu_custom_call.1} parent=1 // pred_check_branch
      %33 = sbr.rel (0) target = $region13
    $region12: #{tpu_custom_call.1} parent=1 // pred_region
      %34 = dma.done [#allocation3], 512
    $region13: #{tpu_custom_call.1} parent=1 // pred_fallthru
      _
    // Predicated region
    $region14: #{tpu_custom_call.1} parent=1 // pred_check
      _
    $region15: #{tpu_custom_call.1} parent=1 // pred_check_branch
      %36 = sbr.rel (0) target = $region17
    $region16: #{tpu_custom_call.1} parent=1 // pred_region
      %37 = dma.done [#allocation6], 32
    $region17: #{tpu_custom_call.1} parent=1 // pred_fallthru
      _
    %v38 = vld [vmem:[#allocation5] sm:$0x3]
    %v39 = vld [vmem:[#allocation2] sm:$0xff]
    %v40 = vld [vmem:[#allocation2 + $0x8] sm:$0xff]
    %v41 = vld [vmem:[#allocation2 + $0x10] sm:$0xff]
    %v42 = vld [vmem:[#allocation2 + $0x18] sm:$0xff]
    %v43 = vlaneseq
    %v44 = vshrl.u32 %v43, 7
    %v45 = vsub.s32 0, %v44
    %v46 = vrot.slane %v38, %v45
    %v47 = vsub.f32 %v39, %v46
    %v48 = vsub.f32 %v40, %v46
    %v49 = vsub.f32 %v41, %v46
    %v50 = vsub.f32 %v42, %v46
    %v51 = vlaneseq
    %v52 = vshrl.u32 %v51, 7
    %v53 = vsub.s32 1, %v52
    %v54 = vrot.slane %v38, %v53
    %v55 = vmul.f32 %v47, %v54
    %v56 = vmul.f32 %v48, %v54
    %v57 = vmul.f32 %v49, %v54
    %v58 = vmul.f32 %v50, %v54
    %59 = vst [vmem:[#allocation7] sm:$0xff] %v55
    %60 = vst [vmem:[#allocation7 + $0x8] sm:$0xff] %v56
    %61 = vst [vmem:[#allocation7 + $0x10] sm:$0xff] %v57
    %62 = vst [vmem:[#allocation7 + $0x18] sm:$0xff] %v58
    // Predicated region
    $region18: #{tpu_custom_call.1} parent=1 // pred_check
      _
    $region19: #{tpu_custom_call.1} parent=1 // pred_check_branch
      %64 = sbr.rel (0) target = $region21
    $region20: #{tpu_custom_call.1} parent=1 // pred_region
      %s66 = ssub.s32 512, 512
      %67 = vsyncadd [#allocation4], %s66
      %s68 = sshll.u32 [#allocation7], 4
      %s69 = int_to_ptr.vmem [resolvable:$true] %s68
      %74 = dma.vmem_to_hbm [thread:$0]  %s69, 512, %s2, [#allocation4], 128, 128, 8
    $region21: #{tpu_custom_call.1} parent=1 // pred_fallthru
      _
    // Predicated region
    $region22: #{tpu_custom_call.1} parent=1 // pred_check
      _
    $region23: #{tpu_custom_call.1} parent=1 // pred_check_branch
      %76 = sbr.rel (0) target = $region25
    $region24: #{tpu_custom_call.1} parent=1 // pred_region
      %77 = dma.done [#allocation4], 512
    $region25: #{tpu_custom_call.1} parent=1 // pred_fallthru
      _
    %78 = vsyncpa [#allocation3], 1
    %79 = vsyncpa [#allocation6], 1
    %80 = vsyncpa [#allocation4], 1

</llo_original>
